<compile_context>
chip_gen: v5e
topology: v5e:2x2
jax: 0.10.0
libtpu: 0.0.40
codegen_flags: <defaults>
</compile_context>

<pallas_src>
import jax
import jax.numpy as jnp
from jax.experimental import pallas as pl
from jax.experimental.pallas import tpu as pltpu


# ----------------------- parameters (unused by forward, kept for parity) -----
def init_params():
    # Net.p1 = zeros(2), Net.mean buffer = zeros(1), Module1.model1 = ones(2)
    return {
        "p1": jnp.zeros((2,), jnp.float32),
        "mean": jnp.zeros((1,), jnp.float32),
        "model.model1": jnp.ones((2,), jnp.float32),
    }


# ----------------------------- Pallas kernel ---------------------------------
def _identity_block_kernel(x_ref, o_ref):
    o_ref[...] = x_ref[...]


def _sublane_multiple(dtype) -> int:
    # 8 rows/vreg for 32-bit, 16 for 16-bit, 32 for 8-bit dtypes.
    itemsize = jnp.dtype(dtype).itemsize
    return max(8, 32 // max(itemsize, 1))


def _tiny_block_shape(shape, dtype):
    """Smallest valid block: leading dims 1; each of the last two dims is a
    single (sublane, 128) tile when the array dim is divisible, else the full
    extent (both satisfy the Pallas (8,128) block rule)."""
    ndim = len(shape)
    sub = _sublane_multiple(dtype)
    rows, cols = shape[-2], shape[-1]
    brows = sub if (rows >= sub and rows % sub == 0) else rows
    bcols = 128 if (cols >= 128 and cols % 128 == 0) else cols
    return (1,) * (ndim - 2) + (brows, bcols)


def pallas_identity(x):
    """Identity as a Pallas kernel with near-zero HBM traffic.

    The output aliases the input buffer (input_output_aliases={0: 0}), so only
    one tiny block is DMA'd through VMEM; every other output element already
    holds the input value. NOTE: this donates `x`'s buffer (like torch
    returning the same tensor object) — do not reuse `x` after calling this.
    """
    if x.size == 0:
        return x

    orig_shape = x.shape
    if x.ndim < 2:
        x = x.reshape(1, -1)

    block_shape = _tiny_block_shape(x.shape, x.dtype)
    zero_index = (0,) * x.ndim

    out = pl.pallas_call(
        _identity_block_kernel,
        out_shape=jax.ShapeDtypeStruct(x.shape, x.dtype),
        grid=(1,),
        in_specs=[pl.BlockSpec(block_shape, lambda i: zero_index)],
        out_specs=pl.BlockSpec(block_shape, lambda i: zero_index),
        # Output buffer == input buffer: regions the grid never visits already
        # contain the input data, so the identity is complete after copying
        # just the one tiny block.
        input_output_aliases={0: 0},
        compiler_params=pltpu.CompilerParams(
            dimension_semantics=("arbitrary",),
        ),
    )(x)

    return out.reshape(orig_shape) if out.shape != orig_shape else out


# ----------------------------- module forward --------------------------------
def net_forward(params, x, *, use_pallas_kernel=True):
    # Net.forward(inputs) -> inputs; p1 / mean / model.model1 are unused.
    del params
    if not use_pallas_kernel:
        return x  # zero-cost path, exact torch semantics
    return pallas_identity(x)


if __name__ == "__main__":
    key = jax.random.PRNGKey(0)
    # NCHW input, small shapes: batch=2, channels=4, spatial=16
    x = jax.random.normal(key, (2, 4, 16, 16), dtype=jnp.float32)

    params = init_params()
    y = net_forward(params, x)
    y = jax.block_until_ready(y)

    # The pallas path aliases/donates x's buffer (just as torch forward returns
    # the same tensor), so verify against a reference regenerated from the same
    # key instead of reusing x.
    x_check = jax.random.normal(key, (2, 4, 16, 16), dtype=jnp.float32)
    assert y.shape == x_check.shape and y.dtype == x_check.dtype
    assert bool(jnp.all(y == x_check))
    print("KERNEL_OK")
</pallas_src>

<mosaic_0001>
module attributes {stable_mosaic.version = 11 : i64} {
  func.func @_identity_block_kernel(%arg0: i32, %arg1: memref<1x1x8x16xf32, #tpu.memory_space<vmem>>, %arg2: memref<1x1x8x16xf32, #tpu.memory_space<vmem>>) attributes {dimension_semantics = [#tpu.dimension_semantics<arbitrary>], iteration_bounds = array<i64: 1>, scalar_prefetch = 0 : i64, scratch_operands = 0 : i64, tpu.core_type = #tpu.core_type<tc>, window_params = [{transform_indices = @transform_0, window_bounds = array<i64: 1, 1, 8, 16>}, {transform_indices = @transform_1, window_bounds = array<i64: 1, 1, 8, 16>}]} {
    %c0 = arith.constant 0 : index
    %c0_0 = arith.constant 0 : index
    %c0_1 = arith.constant 0 : index
    %c0_2 = arith.constant 0 : index
    %0 = vector.load %arg1[%c0, %c0_0, %c0_1, %c0_2] : memref<1x1x8x16xf32, #tpu.memory_space<vmem>>, vector<1x1x8x16xf32>
    %c0_3 = arith.constant 0 : index
    %c0_4 = arith.constant 0 : index
    %c0_5 = arith.constant 0 : index
    %c0_6 = arith.constant 0 : index
    %1 = vector.load %arg2[%c0_3, %c0_4, %c0_5, %c0_6] : memref<1x1x8x16xf32, #tpu.memory_space<vmem>>, vector<1x1x8x16xf32>
    tpu.vector_store %arg2[%c0_3, %c0_4, %c0_5, %c0_6], %0 {strides = array<i32>} : memref<1x1x8x16xf32, #tpu.memory_space<vmem>>, vector<1x1x8x16xf32>,
    return
  }
  func.func @transform_0(%arg0: i32) -> (i32, i32, i32, i32) {
    %c0_i32 = arith.constant 0 : i32
    %c0_i32_0 = arith.constant 0 : i32
    %c0_i32_1 = arith.constant 0 : i32
    %c0_i32_2 = arith.constant 0 : i32
    %c0_i32_3 = arith.constant 0 : i32
    return %c0_i32, %c0_i32_0, %c0_i32_1, %c0_i32_2 : i32, i32, i32, i32
  }
  func.func @transform_1(%arg0: i32) -> (i32, i32, i32, i32) {
    %c0_i32 = arith.constant 0 : i32
    %c0_i32_0 = arith.constant 0 : i32
    %c0_i32_1 = arith.constant 0 : i32
    %c0_i32_2 = arith.constant 0 : i32
    %c0_i32_3 = arith.constant 0 : i32
    return %c0_i32, %c0_i32_0, %c0_i32_1, %c0_i32_2 : i32, i32, i32, i32
  }
}

</mosaic_0001>

<llo_original>
// kernel: tpu_custom_call.1
$region0: #{tpu_custom_call.1}
  #allocation0 [shape = 'u32[]', space=smem, size = 0x4, offset = 0x4, fixed_abs, tag = 'smem constant byte address 0x4 - core index']
  #allocation1 [shape = 'u32[72,128]{1,0:T(1,128)}', space=vmem, size = 0x9000, scoped, tag = 'internal scratch']
  %s0 = inlined_call_operand.hbm [shape: f32[2,4,16,16], index: 0, kind: input, shape index: {}, may-alias: {0,1}]
  %s1 = inlined_call_operand.hbm [shape: f32[2,4,16,16], index: 1, kind: output, shape index: {}, may-alias: {0,1}]
  %s2 = sld [smem:[#allocation0]]
  $region18: #{tpu_custom_call.1} parent=0
    _
  %s4 = ssub.s32 1, %s2
  %s5 = scalar_select 0, %s4, %s2
  $region1: #{tpu_custom_call.1} parent=0
    #allocation2 [shape = 'u8[4096]{0}', space=vmem, size = 0x1000, scoped, tag = 'input window, operand 0, single buffered']
    #allocation3 [shape = 's32[1]{0}', space=sflag, size = 0x4, scoped, tag = 'scoped memory for tpu_custom_call.1']
    #allocation4 [shape = 's32[1]{0}', space=sflag, size = 0x4, scoped, tag = 'scoped memory for tpu_custom_call.1']
    #allocation5 [shape = 'u8[4096]{0}', space=vmem, size = 0x1000, scoped, tag = 'output window, operand 0, single buffered']
    %6 = vsyncpa [#allocation3], 0
    %7 = vsyncpa [#allocation4], 0
    // Predicated region
    $region2: #{tpu_custom_call.1} parent=1 // pred_check
      _
    $region3: #{tpu_custom_call.1} parent=1 // pred_check_branch
      %9 = sbr.rel (0) target = $region5
    $region4: #{tpu_custom_call.1} parent=1 // pred_region
      %11 = vsyncadd [#allocation3], 0
      %s13 = sshll.u32 %s0, 4
      %s14 = int_to_ptr.hbm [resolvable:$true] %s13
      %s15 = sshll.u32 [#allocation2], 4
      %s16 = int_to_ptr.vmem [resolvable:$true] %s15
      %18 = dma.hbm_to_vmem [thread:$0]  %s14, 128, %s16, [#allocation3]
    $region5: #{tpu_custom_call.1} parent=1 // pred_fallthru
      _
    // Predicated region
    $region6: #{tpu_custom_call.1} parent=1 // pred_check
      _
    $region7: #{tpu_custom_call.1} parent=1 // pred_check_branch
      %20 = sbr.rel (0) target = $region9
    $region8: #{tpu_custom_call.1} parent=1 // pred_region
      %22 = dma.done [#allocation3], 128
    $region9: #{tpu_custom_call.1} parent=1 // pred_fallthru
      _
    %v23 = vld [vmem:[#allocation2] sm:$0xff]
    %vm24 = vcmask 130048
    %25 = vst.msk [vmem:[#allocation5] sm:$0xff] %vm24, %v23
    // Predicated region
    $region10: #{tpu_custom_call.1} parent=1 // pred_check
      _
    $region11: #{tpu_custom_call.1} parent=1 // pred_check_branch
      %27 = sbr.rel (0) target = $region13
    $region12: #{tpu_custom_call.1} parent=1 // pred_region
      %29 = vsyncadd [#allocation4], 0
      %s31 = sshll.u32 [#allocation5], 4
      %s32 = int_to_ptr.vmem [resolvable:$true] %s31
      %s33 = sshll.u32 %s1, 4
      %s34 = int_to_ptr.hbm [resolvable:$true] %s33
      %36 = dma.vmem_to_hbm [thread:$0]  %s32, 128, %s34, [#allocation4]
    $region13: #{tpu_custom_call.1} parent=1 // pred_fallthru
      _
    // Predicated region
    $region14: #{tpu_custom_call.1} parent=1 // pred_check
      _
    $region15: #{tpu_custom_call.1} parent=1 // pred_check_branch
      %38 = sbr.rel (0) target = $region17
    $region16: #{tpu_custom_call.1} parent=1 // pred_region
      %40 = dma.done [#allocation4], 128
    $region17: #{tpu_custom_call.1} parent=1 // pred_fallthru
      _
    %41 = vsyncpa [#allocation3], 1
    %42 = vsyncpa [#allocation4], 1

</llo_original>
